<compile_context>
chip_gen: v7x
topology: tpu7x:2x2x1
jax: 0.10.0
libtpu: 0.0.40
codegen_flags: <defaults>
</compile_context>

<pallas_src>
import math
import jax
import jax.numpy as jnp
from jax.experimental import pallas as pl
from jax.experimental.pallas import tpu as pltpu

# ---- problem sizes (small, consistent with the module) -----------------------
B = 2                 # batch
CIN = 4               # input channels
H = W = 16            # spatial
KH = KW = 3           # conv kernel (synthetic backbone)
LAST_CHANNEL = 32     # "last_channel" (backbone output channels)
NUM_CLASSES = 10      # fc output
K = KH * KW * CIN     # im2col contraction dim
P = B * H * W         # total spatial positions across the batch (lane-dense: 512)


# ---- Pallas kernel -----------------------------------------------------------
def deep_clusterer_kernel(patch_ref, cw_ref, cb_ref, pool_ref, fw_ref, fb_ref, out_ref):
    # patch_ref: (K, B*H*W)            bf16  im2col patches, lane-dense last dim
    # cw_ref:    (LAST_CHANNEL, K)     bf16  conv weight (transposed im2col layout)
    # cb_ref:    (LAST_CHANNEL, 1)     f32   conv bias (broadcast over lanes)
    # pool_ref:  (B*H*W, B)            f32   block-diagonal 1/(H*W) pooling matrix
    # fw_ref:    (NUM_CLASSES, LAST_CHANNEL)  f32  fc weight
    # fb_ref:    (NUM_CLASSES, 1)      f32   fc bias
    # out_ref:   (NUM_CLASSES, B)      f32   logits (transposed; wrapper flips to (B, C))

    # backbone.features: conv as one batched matmul on the MXU, f32 accumulation.
    # feat: (LAST_CHANNEL, B*H*W) -> fully lane-dense (512 lanes).
    feat = jnp.dot(cw_ref[...], patch_ref[...], preferred_element_type=jnp.float32)
    # bias + ReLU on the VPU, f32, dense vregs.
    feat = jnp.maximum(feat + cb_ref[...], 0.0)

    # AdaptiveAvgPool2d((1,1)) + flatten, done on the MXU (no cross-sublane XLU reduce):
    # (C, B*H*W) @ (B*H*W, B) -> (C, B)   with per-batch 1/(H*W) block structure.
    pooled = jnp.dot(feat, pool_ref[...], preferred_element_type=jnp.float32)

    # fc for the whole batch in one matmul: (NUM_CLASSES, C) @ (C, B) + bias.
    logits = jnp.dot(fw_ref[...], pooled, preferred_element_type=jnp.float32) + fb_ref[...]
    out_ref[...] = logits.astype(out_ref.dtype)


def deep_clusterer_forward(x_nchw, conv_w, conv_b, fc_w, fc_b):
    """x_nchw: (B, CIN, H, W) float32. Returns (B, NUM_CLASSES) logits."""
    b, cin, h, w = x_nchw.shape
    assert (b, cin, h, w) == (B, CIN, H, W)

    # ---- glue: layout + im2col (reshape/transpose plumbing only, no heavy compute) ----
    x_nhwc = jnp.transpose(x_nchw, (0, 2, 3, 1))                      # (B, H, W, Cin)
    x_pad = jnp.pad(x_nhwc, ((0, 0), (1, 1), (1, 1), (0, 0)))         # padding=1
    patches = jnp.concatenate(
        [x_pad[:, kh:kh + H, kw:kw + W, :] for kh in range(KH) for kw in range(KW)],
        axis=-1,
    ).reshape(P, K)                                                   # (B*H*W, K)
    # Lane-dense operand: (K, B*H*W); bf16 for MXU-native matmul (f32 accumulate in-kernel).
    patches_t = jnp.transpose(patches, (1, 0)).astype(jnp.bfloat16)   # (K, 512)

    # conv weight (Cout, Cin, KH, KW) -> im2col (KH, KW, Cin, Cout) -> (K, Cout) -> (Cout, K)
    cw_t = jnp.transpose(
        jnp.transpose(conv_w, (2, 3, 1, 0)).reshape(K, LAST_CHANNEL), (1, 0)
    ).astype(jnp.bfloat16)                                            # (32, 36)
    cb_col = conv_b.reshape(LAST_CHANNEL, 1).astype(jnp.float32)

    # Pooling matrix: (B*H*W, B), block-diagonal with 1/(H*W) entries (mean per batch elem).
    pool_mat = (jnp.repeat(jnp.eye(B, dtype=jnp.float32), H * W, axis=0) / float(H * W))

    fw = fc_w.astype(jnp.float32)                                     # (NUM_CLASSES, LAST_CHANNEL)
    fb_col = fc_b.reshape(NUM_CLASSES, 1).astype(jnp.float32)

    out_t = pl.pallas_call(
        deep_clusterer_kernel,
        out_shape=jax.ShapeDtypeStruct((NUM_CLASSES, B), jnp.float32),
        grid_spec=pltpu.PrefetchScalarGridSpec(
            num_scalar_prefetch=0,
            grid=(1,),   # single step: whole batch in one kernel invocation
            in_specs=[
                pl.BlockSpec((K, P), lambda i: (0, 0)),
                pl.BlockSpec((LAST_CHANNEL, K), lambda i: (0, 0)),
                pl.BlockSpec((LAST_CHANNEL, 1), lambda i: (0, 0)),
                pl.BlockSpec((P, B), lambda i: (0, 0)),
                pl.BlockSpec((NUM_CLASSES, LAST_CHANNEL), lambda i: (0, 0)),
                pl.BlockSpec((NUM_CLASSES, 1), lambda i: (0, 0)),
            ],
            out_specs=pl.BlockSpec((NUM_CLASSES, B), lambda i: (0, 0)),
        ),
        compiler_params=pltpu.CompilerParams(dimension_semantics=("arbitrary",)),
    )(patches_t, cw_t, cb_col, pool_mat, fw, fb_col)

    return jnp.transpose(out_t, (1, 0))                               # (B, NUM_CLASSES)


# ---- pure-JAX reference for verification ------------------------------------
def reference_forward(x_nchw, conv_w, conv_b, fc_w, fc_b, matmul_dtype=jnp.float32):
    b = x_nchw.shape[0]
    x_nhwc = jnp.transpose(x_nchw, (0, 2, 3, 1))
    x_pad = jnp.pad(x_nhwc, ((0, 0), (1, 1), (1, 1), (0, 0)))
    patches = jnp.concatenate(
        [x_pad[:, kh:kh + H, kw:kw + W, :] for kh in range(KH) for kw in range(KW)],
        axis=-1,
    ).reshape(b, H * W, K)
    cw = jnp.transpose(conv_w, (2, 3, 1, 0)).reshape(K, LAST_CHANNEL)
    # Optionally round conv-matmul operands to matmul_dtype (models the bf16 MXU path).
    patches_m = patches.astype(matmul_dtype).astype(jnp.float32)
    cw_m = cw.astype(matmul_dtype).astype(jnp.float32)
    feat = jnp.maximum(
        jnp.einsum("bpk,kc->bpc", patches_m, cw_m) + conv_b[None, None, :], 0.0
    )
    pooled = jnp.mean(feat, axis=1)                                   # (B, LAST_CHANNEL)
    return pooled @ fc_w.T + fc_b[None, :]


if __name__ == "__main__":
    key = jax.random.PRNGKey(0)
    k_x, k_cw, k_fw = jax.random.split(key, 3)

    # deterministic params following _initialize_weights():
    #   Conv2d: normal(0, sqrt(2 / (kh*kw*out_channels))), bias = 0
    #   Linear: normal(0, 0.01), bias = 0
    conv_std = math.sqrt(2.0 / (KH * KW * LAST_CHANNEL))
    conv_w = conv_std * jax.random.normal(k_cw, (LAST_CHANNEL, CIN, KH, KW), jnp.float32)
    conv_b = jnp.zeros((LAST_CHANNEL,), jnp.float32)
    fc_w = 0.01 * jax.random.normal(k_fw, (NUM_CLASSES, LAST_CHANNEL), jnp.float32)
    fc_b = jnp.zeros((NUM_CLASSES,), jnp.float32)

    x = jax.random.normal(k_x, (B, CIN, H, W), jnp.float32)

    out = deep_clusterer_forward(x, conv_w, conv_b, fc_w, fc_b)
    out = jax.block_until_ready(out)
    assert out.shape == (B, NUM_CLASSES)

    # Tight check against a reference that rounds the conv operands to bf16 (same MXU path).
    ref_bf16 = reference_forward(x, conv_w, conv_b, fc_w, fc_b, matmul_dtype=jnp.bfloat16)
    assert jnp.allclose(out, ref_bf16, atol=1e-3, rtol=1e-3), (out, ref_bf16)

    # Loose check against the full-f32 module semantics (bf16 MXU operands only add ~1e-4).
    ref_f32 = reference_forward(x, conv_w, conv_b, fc_w, fc_b)
    assert jnp.allclose(out, ref_f32, atol=5e-3, rtol=5e-2), (out, ref_f32)

    print("KERNEL_OK")
</pallas_src>

<mosaic_0001>
module attributes {stable_mosaic.version = 11 : i64} {
  func.func @deep_clusterer_kernel(%arg0: i32, %arg1: memref<36x512xbf16, #tpu.memory_space<vmem>>, %arg2: memref<32x36xbf16, #tpu.memory_space<vmem>>, %arg3: memref<32x1xf32, #tpu.memory_space<vmem>>, %arg4: memref<512x2xf32, #tpu.memory_space<vmem>>, %arg5: memref<10x32xf32, #tpu.memory_space<vmem>>, %arg6: memref<10x1xf32, #tpu.memory_space<vmem>>, %arg7: memref<10x2xf32, #tpu.memory_space<vmem>>) attributes {dimension_semantics = [#tpu.dimension_semantics<arbitrary>], iteration_bounds = array<i64: 1>, scalar_prefetch = 0 : i64, scratch_operands = 0 : i64, tpu.core_type = #tpu.core_type<tc>, window_params = [{pipeline_mode = #tpu.pipeline_mode<synchronous>, transform_indices = @transform_0, window_bounds = array<i64: 36, 512>}, {pipeline_mode = #tpu.pipeline_mode<synchronous>, transform_indices = @transform_1, window_bounds = array<i64: 32, 36>}, {pipeline_mode = #tpu.pipeline_mode<synchronous>, transform_indices = @transform_2, window_bounds = array<i64: 32, 1>}, {pipeline_mode = #tpu.pipeline_mode<synchronous>, transform_indices = @transform_3, window_bounds = array<i64: 512, 2>}, {pipeline_mode = #tpu.pipeline_mode<synchronous>, transform_indices = @transform_4, window_bounds = array<i64: 10, 32>}, {pipeline_mode = #tpu.pipeline_mode<synchronous>, transform_indices = @transform_5, window_bounds = array<i64: 10, 1>}, {pipeline_mode = #tpu.pipeline_mode<synchronous>, transform_indices = @transform_6, window_bounds = array<i64: 10, 2>}]} {
    %c0 = arith.constant 0 : index
    %c0_0 = arith.constant 0 : index
    %0 = vector.load %arg2[%c0, %c0_0] : memref<32x36xbf16, #tpu.memory_space<vmem>>, vector<32x36xbf16>
    %c0_1 = arith.constant 0 : index
    %c0_2 = arith.constant 0 : index
    %1 = vector.load %arg1[%c0_1, %c0_2] : memref<36x512xbf16, #tpu.memory_space<vmem>>, vector<36x512xbf16>
    %cst = arith.constant dense<0.000000e+00> : vector<32x512xf32>
    %2 = tpu.matmul %0, %1, %cst {dimension_numbers = #tpu.dot_dimension_numbers<[1], [0], [0], [1], [0, 0, 1, 1], [], []>} : vector<32x36xbf16>, vector<36x512xbf16>, vector<32x512xf32> -> vector<32x512xf32>
    %c0_3 = arith.constant 0 : index
    %c0_4 = arith.constant 0 : index
    %3 = vector.load %arg3[%c0_3, %c0_4] : memref<32x1xf32, #tpu.memory_space<vmem>>, vector<32x1xf32>
    %4 = vector.broadcast %3 : vector<32x1xf32> to vector<32x512xf32>
    %5 = arith.addf %2, %4 : vector<32x512xf32>
    %cst_5 = arith.constant 0.000000e+00 : f32
    %6 = vector.broadcast %cst_5 : f32 to vector<32x512xf32>
    %7 = arith.maximumf %5, %6 : vector<32x512xf32>
    %c0_6 = arith.constant 0 : index
    %c0_7 = arith.constant 0 : index
    %8 = vector.load %arg4[%c0_6, %c0_7] : memref<512x2xf32, #tpu.memory_space<vmem>>, vector<512x2xf32>
    %cst_8 = arith.constant dense<0.000000e+00> : vector<32x2xf32>
    %9 = tpu.matmul %7, %8, %cst_8 {dimension_numbers = #tpu.dot_dimension_numbers<[1], [0], [0], [1], [0, 0, 1, 1], [], []>} : vector<32x512xf32>, vector<512x2xf32>, vector<32x2xf32> -> vector<32x2xf32>
    %c0_9 = arith.constant 0 : index
    %c0_10 = arith.constant 0 : index
    %10 = vector.load %arg5[%c0_9, %c0_10] : memref<10x32xf32, #tpu.memory_space<vmem>>, vector<10x32xf32>
    %cst_11 = arith.constant dense<0.000000e+00> : vector<10x2xf32>
    %11 = tpu.matmul %10, %9, %cst_11 {dimension_numbers = #tpu.dot_dimension_numbers<[1], [0], [0], [1], [0, 0, 1, 1], [], []>} : vector<10x32xf32>, vector<32x2xf32>, vector<10x2xf32> -> vector<10x2xf32>
    %c0_12 = arith.constant 0 : index
    %c0_13 = arith.constant 0 : index
    %12 = vector.load %arg6[%c0_12, %c0_13] : memref<10x1xf32, #tpu.memory_space<vmem>>, vector<10x1xf32>
    %13 = vector.broadcast %12 : vector<10x1xf32> to vector<10x2xf32>
    %14 = arith.addf %11, %13 : vector<10x2xf32>
    %c0_14 = arith.constant 0 : index
    %c0_15 = arith.constant 0 : index
    %15 = vector.load %arg7[%c0_14, %c0_15] : memref<10x2xf32, #tpu.memory_space<vmem>>, vector<10x2xf32>
    tpu.vector_store %arg7[%c0_14, %c0_15], %14 {strides = array<i32>} : memref<10x2xf32, #tpu.memory_space<vmem>>, vector<10x2xf32>,
    return
  }
  func.func @transform_0(%arg0: i32) -> (i32, i32) {
    %c0_i32 = arith.constant 0 : i32
    %c0_i32_0 = arith.constant 0 : i32
    %c0_i32_1 = arith.constant 0 : i32
    return %c0_i32, %c0_i32_0 : i32, i32
  }
  func.func @transform_1(%arg0: i32) -> (i32, i32) {
    %c0_i32 = arith.constant 0 : i32
    %c0_i32_0 = arith.constant 0 : i32
    %c0_i32_1 = arith.constant 0 : i32
    return %c0_i32, %c0_i32_0 : i32, i32
  }
  func.func @transform_2(%arg0: i32) -> (i32, i32) {
    %c0_i32 = arith.constant 0 : i32
    %c0_i32_0 = arith.constant 0 : i32
    %c0_i32_1 = arith.constant 0 : i32
    return %c0_i32, %c0_i32_0 : i32, i32
  }
  func.func @transform_3(%arg0: i32) -> (i32, i32) {
    %c0_i32 = arith.constant 0 : i32
    %c0_i32_0 = arith.constant 0 : i32
    %c0_i32_1 = arith.constant 0 : i32
    return %c0_i32, %c0_i32_0 : i32, i32
  }
  func.func @transform_4(%arg0: i32) -> (i32, i32) {
    %c0_i32 = arith.constant 0 : i32
    %c0_i32_0 = arith.constant 0 : i32
    %c0_i32_1 = arith.constant 0 : i32
    return %c0_i32, %c0_i32_0 : i32, i32
  }
  func.func @transform_5(%arg0: i32) -> (i32, i32) {
    %c0_i32 = arith.constant 0 : i32
    %c0_i32_0 = arith.constant 0 : i32
    %c0_i32_1 = arith.constant 0 : i32
    return %c0_i32, %c0_i32_0 : i32, i32
  }
  func.func @transform_6(%arg0: i32) -> (i32, i32) {
    %c0_i32 = arith.constant 0 : i32
    %c0_i32_0 = arith.constant 0 : i32
    %c0_i32_1 = arith.constant 0 : i32
    return %c0_i32, %c0_i32_0 : i32, i32
  }
}

</mosaic_0001>

<llo_original>
// kernel: tpu_custom_call.1
$region0: #{tpu_custom_call.1}
  #allocation0 [shape = 'u32[]', space=smem, size = 0x4, offset = 0x4, fixed_abs, tag = 'smem constant byte address 0x4 - core index']
  #allocation1 [shape = 'u32[144,128]{1,0:T(1,128)}', space=vmem, size = 0x12000, scoped, tag = 'internal scratch']
  %s0 = inlined_call_operand.vmem [shape: bf16[36,512], index: 0, kind: input, shape index: {}]
  %s1 = inlined_call_operand.vmem [shape: bf16[32,36], index: 1, kind: input, shape index: {}]
  %s2 = inlined_call_operand.vmem [shape: f32[32,1], index: 2, kind: input, shape index: {}]
  %s3 = inlined_call_operand.vmem [shape: f32[512,2], index: 3, kind: input, shape index: {}]
  %s4 = inlined_call_operand.vmem [shape: f32[10,32], index: 4, kind: input, shape index: {}]
  %s5 = inlined_call_operand.vmem [shape: f32[10,1], index: 5, kind: input, shape index: {}]
  %s6 = inlined_call_operand.vmem [shape: f32[10,2], index: 6, kind: output, shape index: {}]
  %s7 = sld [smem:[#allocation0]]
  $region34: #{tpu_custom_call.1} parent=0
    _
  %s9 = ssub.s32 1, %s7
  %s10 = scalar_select 0, %s9, %s7
  // Predicated region
  $region2: #{tpu_custom_call.1} parent=0 // pred_check
    _
  $region3: #{tpu_custom_call.1} parent=0 // pred_check_branch
    %12 = sbr.rel (0) target = $region5
  $region4: #{tpu_custom_call.1} parent=0 // pred_region
    _
  $region5: #{tpu_custom_call.1} parent=0 // pred_fallthru
    _
  // Predicated region
  $region6: #{tpu_custom_call.1} parent=0 // pred_check
    _
  $region7: #{tpu_custom_call.1} parent=0 // pred_check_branch
    %14 = sbr.rel (0) target = $region9
  $region8: #{tpu_custom_call.1} parent=0 // pred_region
    _
  $region9: #{tpu_custom_call.1} parent=0 // pred_fallthru
    _
  // Predicated region
  $region10: #{tpu_custom_call.1} parent=0 // pred_check
    _
  $region11: #{tpu_custom_call.1} parent=0 // pred_check_branch
    %16 = sbr.rel (0) target = $region13
  $region12: #{tpu_custom_call.1} parent=0 // pred_region
    _
  $region13: #{tpu_custom_call.1} parent=0 // pred_fallthru
    _
  // Predicated region
  $region14: #{tpu_custom_call.1} parent=0 // pred_check
    _
  $region15: #{tpu_custom_call.1} parent=0 // pred_check_branch
    %18 = sbr.rel (0) target = $region17
  $region16: #{tpu_custom_call.1} parent=0 // pred_region
    _
  $region17: #{tpu_custom_call.1} parent=0 // pred_fallthru
    _
  // Predicated region
  $region18: #{tpu_custom_call.1} parent=0 // pred_check
    _
  $region19: #{tpu_custom_call.1} parent=0 // pred_check_branch
    %20 = sbr.rel (0) target = $region21
  $region20: #{tpu_custom_call.1} parent=0 // pred_region
    _
  $region21: #{tpu_custom_call.1} parent=0 // pred_fallthru
    _
  // Predicated region
  $region22: #{tpu_custom_call.1} parent=0 // pred_check
    _
  $region23: #{tpu_custom_call.1} parent=0 // pred_check_branch
    %22 = sbr.rel (0) target = $region25
  $region24: #{tpu_custom_call.1} parent=0 // pred_region
    _
  $region25: #{tpu_custom_call.1} parent=0 // pred_fallthru
    _
  %v24 = vld [vmem:[%s1] sm:$0xf]
  %v25 = vld [vmem:[%s1 + $0x4] sm:$0xf]
  %v26 = vld [vmem:[%s1 + $0x8] sm:$0xf]
  %v27 = vld [vmem:[%s1 + $0xc] sm:$0xf]
  %v28 = vld [vmem:[%s0] sm:$0xff]
  %v29 = vld [vmem:[%s0 + $0x8] sm:$0xff]
  %v30 = vld [vmem:[%s0 + $0x10] sm:$0xff]
  %v31 = vld [vmem:[%s0 + $0x18] sm:$0xff]
  %v32 = vld [vmem:[%s0 + $0x20] sm:$0xff]
  %v33 = vld [vmem:[%s0 + $0x28] sm:$0xff]
  %v34 = vld [vmem:[%s0 + $0x30] sm:$0xff]
  %v35 = vld [vmem:[%s0 + $0x38] sm:$0xff]
  %v36 = vld [vmem:[%s0 + $0x40] sm:$0x33]
  %v37 = vld [vmem:[%s0 + $0x48] sm:$0x33]
  %v38 = vld [vmem:[%s2] sm:$0xff]
  %v39 = vld [vmem:[%s2 + $0x8] sm:$0xff]
  %v40 = vld [vmem:[%s2 + $0x10] sm:$0xff]
  %v41 = vld [vmem:[%s2 + $0x18] sm:$0xff]
  %43 = vset.pattern.permute.xlu0 0
  %44 = vperm.xlu0 %43, %v38
  %v45 = vpop.permute.xlu0 %44
  %48 = vset.pattern.permute.xlu0 0
  %49 = vperm.xlu0 %48, %v39
  %v50 = vpop.permute.xlu0 %49
  %53 = vset.pattern.permute.xlu0 0
  %54 = vperm.xlu0 %53, %v40
  %v55 = vpop.permute.xlu0 %54
  %58 = vset.pattern.permute.xlu0 0
  %59 = vperm.xlu0 %58, %v41
  %v60 = vpop.permute.xlu0 %59
  %v66 = vunpack.c.l.b16 %v24
  %v67 = vunpack.c.l.b16 %v25
  %v68 = vunpack.c.l.b16 %v26
  %v69 = vunpack.c.l.b16 %v27
  %v70 = vpack.c.b16 %v67, %v66
  %v71 = vpack.c.b16 %v69, %v68
  %v82 = vunpack.c.l.b16 %v28
  %v83 = vunpack.c.h.b16 %v28
  %v84 = vunpack.c.l.b16 %v29
  %v85 = vunpack.c.h.b16 %v29
  %v86 = vunpack.c.l.b16 %v30
  %v87 = vunpack.c.h.b16 %v30
  %v88 = vunpack.c.l.b16 %v31
  %v89 = vunpack.c.h.b16 %v31
  %v90 = vunpack.c.l.b16 %v32
  %v91 = vunpack.c.h.b16 %v32
  %v92 = vunpack.c.l.b16 %v33
  %v93 = vunpack.c.h.b16 %v33
  %v94 = vunpack.c.l.b16 %v34
  %v95 = vunpack.c.h.b16 %v34
  %v96 = vunpack.c.l.b16 %v35
  %v97 = vunpack.c.h.b16 %v35
  %v98 = vunpack.c.l.b16 %v36
  %v99 = vunpack.c.h.b16 %v36
  %v100 = vunpack.c.l.b16 %v37
  %v101 = vunpack.c.h.b16 %v37
  %v102 = vpack.c.b16 %v86, %v82
  %v103 = vpack.c.b16 %v87, %v83
  %v104 = vpack.c.b16 %v88, %v84
  %v105 = vpack.c.b16 %v89, %v85
  %v106 = vpack.c.b16 %v94, %v90
  %v107 = vpack.c.b16 %v95, %v91
  %v108 = vpack.c.b16 %v96, %v92
  %v109 = vpack.c.b16 %v97, %v93
  %v110 = vpack.c.b16 %v98, %v98
  %v111 = vpack.c.b16 %v99, %v99
  %v112 = vpack.c.b16 %v100, %v100
  %v113 = vpack.c.b16 %v101, %v101
  %vm122 = vcmask 293888
  %v124 = vsel %vm122, %v70, 0
  %v127 = vsel %vm122, %v71, 0
  %vm129 = vcmask 1041408
  %v131 = vsel %vm129, %v110, 0
  %v134 = vsel %vm129, %v111, 0
  %v137 = vsel %vm129, %v112, 0
  %v140 = vsel %vm129, %v113, 0
  %142 = vmatprep.subr.bf16.mxu0 %v103
  %143 = vmatpush1.bf16.msra.mxu0 %v102
  %144 = vmatprep.subr.bf16.mxu0 %v107
  %145 = vmatpush1.bf16.msra.mxu0 %v106
  %146 = vmatprep.subr.bf16.mxu0 %v134
  %147 = vmatpush1.bf16.msra.mxu0 %v131
  %148 = vmatprep.subr.bf16.mxu0 0
  %149 = vmatpush1.bf16.msra.mxu0 0
  %150 = vmatprep.subr.bf16.mxu0 0
  %151 = vmatpush1.bf16.msra.mxu0 0
  %152 = vmatprep.subr.bf16.mxu0 0
  %153 = vmatpush1.bf16.msra.mxu0 0
  %154 = vmatprep.subr.bf16.mxu0 0
  %155 = vmatpush1.bf16.msra.mxu0 0
  %156 = vmatprep.subr.bf16.mxu0 0
  %157 = vmatpush1.bf16.msra.mxu0 0
  %158 = vmatprep.subr.bf16.mxu0 0
  %159 = vmatpush1.bf16.msra.mxu0 0
  %160 = vmatprep.subr.bf16.mxu0 0
  %161 = vmatpush1.bf16.msra.mxu0 0
  %162 = vmatprep.subr.bf16.mxu0 0
  %163 = vmatpush1.bf16.msra.mxu0 0
  %164 = vmatprep.subr.bf16.mxu0 0
  %165 = vmatpush1.bf16.msra.mxu0 0
  %166 = vmatprep.subr.bf16.mxu0 0
  %167 = vmatpush1.bf16.msra.mxu0 0
  %168 = vmatprep.subr.bf16.mxu0 0
  %169 = vmatpush1.bf16.msra.mxu0 0
  %170 = vmatprep.subr.bf16.mxu0 0
  %171 = vmatpush1.bf16.msra.mxu0 0
  %172 = vmatprep.subr.bf16.mxu0 0
  %173 = vmatpush1.bf16.msra.mxu0 0
  %174 = vmatprep.mubr.bf16.mxu0 0
  %175 = vmatmul.mubr.bf16.gmra.mrb[0].mxu0 %v124
  %v176 = vpop.f32.mrb[0].mxu0
  %v177 = vadd.f32 %v45, %v176
  %v178 = vpop.f32.mrb[0].mxu0
  %v179 = vadd.f32 %v45, %v178
  %v180 = vpop.f32.mrb[0].mxu0
  %v181 = vadd.f32 %v50, %v180
  %v182 = vpop.f32.mrb[0].mxu0
  %v183 = vadd.f32 %v50, %v182
  %184 = vmatprep.mubr.bf16.mxu0 0
  %185 = vmatmul.mubr.bf16.gmra.mrb[0].mxu0 %v127
  %v186 = vpop.f32.mrb[0].mxu0
  %v187 = vadd.f32 %v55, %v186
  %v188 = vpop.f32.mrb[0].mxu0
  %v189 = vadd.f32 %v55, %v188
  %v190 = vpop.f32.mrb[0].mxu0
  %v191 = vadd.f32 %v60, %v190
  %v192 = vpop.f32.mrb[0].mxu0
  %v193 = vadd.f32 %v60, %v192
  %194 = vdwg.mxu0
  %195 = vmatprep.subr.bf16.mxu0 %v105
  %196 = vmatpush1.bf16.msra.mxu0 %v104
  %197 = vmatprep.subr.bf16.mxu0 %v109
  %198 = vmatpush1.bf16.msra.mxu0 %v108
  %199 = vmatprep.subr.bf16.mxu0 %v140
  %200 = vmatpush1.bf16.msra.mxu0 %v137
  %201 = vmatprep.subr.bf16.mxu0 0
  %202 = vmatpush1.bf16.msra.mxu0 0
  %203 = vmatprep.subr.bf16.mxu0 0
  %204 = vmatpush1.bf16.msra.mxu0 0
  %205 = vmatprep.subr.bf16.mxu0 0
  %206 = vmatpush1.bf16.msra.mxu0 0
  %207 = vmatprep.subr.bf16.mxu0 0
  %208 = vmatpush1.bf16.msra.mxu0 0
  %209 = vmatprep.subr.bf16.mxu0 0
  %210 = vmatpush1.bf16.msra.mxu0 0
  %211 = vmatprep.subr.bf16.mxu0 0
  %212 = vmatpush1.bf16.msra.mxu0 0
  %213 = vmatprep.subr.bf16.mxu0 0
  %214 = vmatpush1.bf16.msra.mxu0 0
  %215 = vmatprep.subr.bf16.mxu0 0
  %216 = vmatpush1.bf16.msra.mxu0 0
  %217 = vmatprep.subr.bf16.mxu0 0
  %218 = vmatpush1.bf16.msra.mxu0 0
  %219 = vmatprep.subr.bf16.mxu0 0
  %220 = vmatpush1.bf16.msra.mxu0 0
  %221 = vmatprep.subr.bf16.mxu0 0
  %222 = vmatpush1.bf16.msra.mxu0 0
  %223 = vmatprep.subr.bf16.mxu0 0
  %224 = vmatpush1.bf16.msra.mxu0 0
  %225 = vmatprep.subr.bf16.mxu0 0
  %226 = vmatpush1.bf16.msra.mxu0 0
  %227 = vmatprep.mubr.bf16.mxu0 0
  %228 = vmatmul.mubr.bf16.gmra.mrb[0].mxu0 %v124
  %v229 = vpop.f32.mrb[0].mxu0
  %v230 = vadd.f32 %v45, %v229
  %v231 = vpop.f32.mrb[0].mxu0
  %v232 = vadd.f32 %v45, %v231
  %v233 = vpop.f32.mrb[0].mxu0
  %v234 = vadd.f32 %v50, %v233
  %v235 = vpop.f32.mrb[0].mxu0
  %v236 = vadd.f32 %v50, %v235
  %237 = vmatprep.mubr.bf16.mxu0 0
  %238 = vmatmul.mubr.bf16.gmra.mrb[0].mxu0 %v127
  %v239 = vpop.f32.mrb[0].mxu0
  %v240 = vadd.f32 %v55, %v239
  %v241 = vpop.f32.mrb[0].mxu0
  %v242 = vadd.f32 %v55, %v241
  %v243 = vpop.f32.mrb[0].mxu0
  %v244 = vadd.f32 %v60, %v243
  %v245 = vpop.f32.mrb[0].mxu0
  %v246 = vadd.f32 %v60, %v245
  %247 = vdwg.mxu0
  %v248 = vmax.f32 %v177, 0.0
  %v249 = vmax.f32 %v179, 0.0
  %v250 = vmax.f32 %v230, 0.0
  %v251 = vmax.f32 %v232, 0.0
  %v252 = vmax.f32 %v181, 0.0
  %v253 = vmax.f32 %v183, 0.0
  %v254 = vmax.f32 %v234, 0.0
  %v255 = vmax.f32 %v236, 0.0
  %v256 = vmax.f32 %v187, 0.0
  %v257 = vmax.f32 %v189, 0.0
  %v258 = vmax.f32 %v240, 0.0
  %v259 = vmax.f32 %v242, 0.0
  %v260 = vmax.f32 %v191, 0.0
  %v261 = vmax.f32 %v193, 0.0
  %v262 = vmax.f32 %v244, 0.0
  %v263 = vmax.f32 %v246, 0.0
  %v264 = vld [vmem:[%s3] sm:$0xff]
  %v265 = vld [vmem:[%s3 + $0x8] sm:$0xff]
  %v266 = vld [vmem:[%s3 + $0x10] sm:$0xff]
  %v267 = vld [vmem:[%s3 + $0x18] sm:$0xff]
  %v268 = vld [vmem:[%s3 + $0x20] sm:$0xff]
  %v269 = vld [vmem:[%s3 + $0x28] sm:$0xff]
  %v270 = vld [vmem:[%s3 + $0x30] sm:$0xff]
  %v271 = vld [vmem:[%s3 + $0x38] sm:$0xff]
  %v272 = vld [vmem:[%s3 + $0x40] sm:$0xff]
  %v273 = vld [vmem:[%s3 + $0x48] sm:$0xff]
  %v274 = vld [vmem:[%s3 + $0x50] sm:$0xff]
  %v275 = vld [vmem:[%s3 + $0x58] sm:$0xff]
  %v276 = vld [vmem:[%s3 + $0x60] sm:$0xff]
  %v277 = vld [vmem:[%s3 + $0x68] sm:$0xff]
  %v278 = vld [vmem:[%s3 + $0x70] sm:$0xff]
  %v279 = vld [vmem:[%s3 + $0x78] sm:$0xff]
  %v280 = vld [vmem:[%s3 + $0x80] sm:$0xff]
  %v281 = vld [vmem:[%s3 + $0x88] sm:$0xff]
  %v282 = vld [vmem:[%s3 + $0x90] sm:$0xff]
  %v283 = vld [vmem:[%s3 + $0x98] sm:$0xff]
  %v284 = vld [vmem:[%s3 + $0xa0] sm:$0xff]
  %v285 = vld [vmem:[%s3 + $0xa8] sm:$0xff]
  %v286 = vld [vmem:[%s3 + $0xb0] sm:$0xff]
  %v287 = vld [vmem:[%s3 + $0xb8] sm:$0xff]
  %v288 = vld [vmem:[%s3 + $0xc0] sm:$0xff]
  %v289 = vld [vmem:[%s3 + $0xc8] sm:$0xff]
  %v290 = vld [vmem:[%s3 + $0xd0] sm:$0xff]
  %v291 = vld [vmem:[%s3 + $0xd8] sm:$0xff]
  %v292 = vld [vmem:[%s3 + $0xe0] sm:$0xff]
  %v293 = vld [vmem:[%s3 + $0xe8] sm:$0xff]
  %v294 = vld [vmem:[%s3 + $0xf0] sm:$0xff]
  %v295 = vld [vmem:[%s3 + $0xf8] sm:$0xff]
  %v296 = vld [vmem:[%s3 + $0x100] sm:$0xff]
  %v297 = vld [vmem:[%s3 + $0x108] sm:$0xff]
  %v298 = vld [vmem:[%s3 + $0x110] sm:$0xff]
  %v299 = vld [vmem:[%s3 + $0x118] sm:$0xff]
  %v300 = vld [vmem:[%s3 + $0x120] sm:$0xff]
  %v301 = vld [vmem:[%s3 + $0x128] sm:$0xff]
  %v302 = vld [vmem:[%s3 + $0x130] sm:$0xff]
  %v303 = vld [vmem:[%s3 + $0x138] sm:$0xff]
  %v304 = vld [vmem:[%s3 + $0x140] sm:$0xff]
  %v305 = vld [vmem:[%s3 + $0x148] sm:$0xff]
  %v306 = vld [vmem:[%s3 + $0x150] sm:$0xff]
  %v307 = vld [vmem:[%s3 + $0x158] sm:$0xff]
  %v308 = vld [vmem:[%s3 + $0x160] sm:$0xff]
  %v309 = vld [vmem:[%s3 + $0x168] sm:$0xff]
  %v310 = vld [vmem:[%s3 + $0x170] sm:$0xff]
  %v311 = vld [vmem:[%s3 + $0x178] sm:$0xff]
  %v312 = vld [vmem:[%s3 + $0x180] sm:$0xff]
  %v313 = vld [vmem:[%s3 + $0x188] sm:$0xff]
  %v314 = vld [vmem:[%s3 + $0x190] sm:$0xff]
  %v315 = vld [vmem:[%s3 + $0x198] sm:$0xff]
  %v316 = vld [vmem:[%s3 + $0x1a0] sm:$0xff]
  %v317 = vld [vmem:[%s3 + $0x1a8] sm:$0xff]
  %v318 = vld [vmem:[%s3 + $0x1b0] sm:$0xff]
  %v319 = vld [vmem:[%s3 + $0x1b8] sm:$0xff]
  %v320 = vld [vmem:[%s3 + $0x1c0] sm:$0xff]
  %v321 = vld [vmem:[%s3 + $0x1c8] sm:$0xff]
  %v322 = vld [vmem:[%s3 + $0x1d0] sm:$0xff]
  %v323 = vld [vmem:[%s3 + $0x1d8] sm:$0xff]
  %v324 = vld [vmem:[%s3 + $0x1e0] sm:$0xff]
  %v325 = vld [vmem:[%s3 + $0x1e8] sm:$0xff]
  %v326 = vld [vmem:[%s3 + $0x1f0] sm:$0xff]
  %v327 = vld [vmem:[%s3 + $0x1f8] sm:$0xff]
  %328 = vmatprep.subr.mxu0 0.0
  %329 = vmatpush1.msra.mxu0 %v264
  %330 = vmatprep.subr.mxu0 0.0
  %331 = vmatpush1.msra.mxu0 %v265
  %332 = vmatprep.subr.mxu0 0.0
  %333 = vmatpush1.msra.mxu0 %v266
  %334 = vmatprep.subr.mxu0 0.0
  %335 = vmatpush1.msra.mxu0 %v267
  %336 = vmatprep.subr.mxu0 0.0
  %337 = vmatpush1.msra.mxu0 %v268
  %338 = vmatprep.subr.mxu0 0.0
  %339 = vmatpush1.msra.mxu0 %v269
  %340 = vmatprep.subr.mxu0 0.0
  %341 = vmatpush1.msra.mxu0 %v270
  %342 = vmatprep.subr.mxu0 0.0
  %343 = vmatpush1.msra.mxu0 %v271
  %344 = vmatprep.subr.mxu0 0.0
  %345 = vmatpush1.msra.mxu0 %v272
  %346 = vmatprep.subr.mxu0 0.0
  %347 = vmatpush1.msra.mxu0 %v273
  %348 = vmatprep.subr.mxu0 0.0
  %349 = vmatpush1.msra.mxu0 %v274
  %350 = vmatprep.subr.mxu0 0.0
  %351 = vmatpush1.msra.mxu0 %v275
  %352 = vmatprep.subr.mxu0 0.0
  %353 = vmatpush1.msra.mxu0 %v276
  %354 = vmatprep.subr.mxu0 0.0
  %355 = vmatpush1.msra.mxu0 %v277
  %356 = vmatprep.subr.mxu0 0.0
  %357 = vmatpush1.msra.mxu0 %v278
  %358 = vmatprep.subr.mxu0 0.0
  %359 = vmatpush1.msra.mxu0 %v279
  %360 = vmatprep.subr.mxu0 0.0
  %361 = vmatpush1.msra.mxu0 %v280
  %362 = vmatprep.subr.mxu0 0.0
  %363 = vmatpush1.msra.mxu0 %v281
  %364 = vmatprep.subr.mxu0 0.0
  %365 = vmatpush1.msra.mxu0 %v282
  %366 = vmatprep.subr.mxu0 0.0
  %367 = vmatpush1.msra.mxu0 %v283
  %368 = vmatprep.subr.mxu0 0.0
  %369 = vmatpush1.msra.mxu0 %v284
  %370 = vmatprep.subr.mxu0 0.0
  %371 = vmatpush1.msra.mxu0 %v285
  %372 = vmatprep.subr.mxu0 0.0
  %373 = vmatpush1.msra.mxu0 %v286
  %374 = vmatprep.subr.mxu0 0.0
  %375 = vmatpush1.msra.mxu0 %v287
  %376 = vmatprep.subr.mxu0 0.0
  %377 = vmatpush1.msra.mxu0 %v288
  %378 = vmatprep.subr.mxu0 0.0
  %379 = vmatpush1.msra.mxu0 %v289
  %380 = vmatprep.subr.mxu0 0.0
  %381 = vmatpush1.msra.mxu0 %v290
  %382 = vmatprep.subr.mxu0 0.0
  %383 = vmatpush1.msra.mxu0 %v291
  %384 = vmatprep.subr.mxu0 0.0
  %385 = vmatpush1.msra.mxu0 %v292
  %386 = vmatprep.subr.mxu0 0.0
  %387 = vmatpush1.msra.mxu0 %v293
  %388 = vmatprep.subr.mxu0 0.0
  %389 = vmatpush1.msra.mxu0 %v294
  %390 = vmatprep.subr.mxu0 0.0
  %391 = vmatpush1.msra.mxu0 %v295
  %392 = vmatprep.mubr.f32.mxu0 %v249
  %393 = vmatmul.mubr.f32.gmra.mrb[0].mxu0 %v248
  %v394 = vpop.f32.mrb[0].mxu0
  %v395 = vadd.f32 0.0, %v394
  %v396 = vpop.f32.mrb[0].mxu0
  %397 = vmatprep.mubr.f32.mxu0 %v253
  %398 = vmatmul.mubr.f32.gmra.mrb[0].mxu0 %v252
  %v399 = vpop.f32.mrb[0].mxu0
  %v400 = vadd.f32 0.0, %v399
  %v401 = vpop.f32.mrb[0].mxu0
  %402 = vmatprep.mubr.f32.mxu0 %v257
  %403 = vmatmul.mubr.f32.gmra.mrb[0].mxu0 %v256
  %v404 = vpop.f32.mrb[0].mxu0
  %v405 = vadd.f32 0.0, %v404
  %v406 = vpop.f32.mrb[0].mxu0
  %407 = vmatprep.mubr.f32.mxu0 %v261
  %408 = vmatmul.mubr.f32.gmra.mrb[0].mxu0 %v260
  %v409 = vpop.f32.mrb[0].mxu0
  %v410 = vadd.f32 0.0, %v409
  %v411 = vpop.f32.mrb[0].mxu0
  %412 = vdwg.mxu0
  %413 = vmatprep.subr.mxu0 0.0
  %414 = vmatpush1.msra.mxu0 %v296
  %415 = vmatprep.subr.mxu0 0.0
  %416 = vmatpush1.msra.mxu0 %v297
  %417 = vmatprep.subr.mxu0 0.0
  %418 = vmatpush1.msra.mxu0 %v298
  %419 = vmatprep.subr.mxu0 0.0
  %420 = vmatpush1.msra.mxu0 %v299
  %421 = vmatprep.subr.mxu0 0.0
  %422 = vmatpush1.msra.mxu0 %v300
  %423 = vmatprep.subr.mxu0 0.0
  %424 = vmatpush1.msra.mxu0 %v301
  %425 = vmatprep.subr.mxu0 0.0
  %426 = vmatpush1.msra.mxu0 %v302
  %427 = vmatprep.subr.mxu0 0.0
  %428 = vmatpush1.msra.mxu0 %v303
  %429 = vmatprep.subr.mxu0 0.0
  %430 = vmatpush1.msra.mxu0 %v304
  %431 = vmatprep.subr.mxu0 0.0
  %432 = vmatpush1.msra.mxu0 %v305
  %433 = vmatprep.subr.mxu0 0.0
  %434 = vmatpush1.msra.mxu0 %v306
  %435 = vmatprep.subr.mxu0 0.0
  %436 = vmatpush1.msra.mxu0 %v307
  %437 = vmatprep.subr.mxu0 0.0
  %438 = vmatpush1.msra.mxu0 %v308
  %439 = vmatprep.subr.mxu0 0.0
  %440 = vmatpush1.msra.mxu0 %v309
  %441 = vmatprep.subr.mxu0 0.0
  %442 = vmatpush1.msra.mxu0 %v310
  %443 = vmatprep.subr.mxu0 0.0
  %444 = vmatpush1.msra.mxu0 %v311
  %445 = vmatprep.subr.mxu0 0.0
  %446 = vmatpush1.msra.mxu0 %v312
  %447 = vmatprep.subr.mxu0 0.0
  %448 = vmatpush1.msra.mxu0 %v313
  %449 = vmatprep.subr.mxu0 0.0
  %450 = vmatpush1.msra.mxu0 %v314
  %451 = vmatprep.subr.mxu0 0.0
  %452 = vmatpush1.msra.mxu0 %v315
  %453 = vmatprep.subr.mxu0 0.0
  %454 = vmatpush1.msra.mxu0 %v316
  %455 = vmatprep.subr.mxu0 0.0
  %456 = vmatpush1.msra.mxu0 %v317
  %457 = vmatprep.subr.mxu0 0.0
  %458 = vmatpush1.msra.mxu0 %v318
  %459 = vmatprep.subr.mxu0 0.0
  %460 = vmatpush1.msra.mxu0 %v319
  %461 = vmatprep.subr.mxu0 0.0
  %462 = vmatpush1.msra.mxu0 %v320
  %463 = vmatprep.subr.mxu0 0.0
  %464 = vmatpush1.msra.mxu0 %v321
  %465 = vmatprep.subr.mxu0 0.0
  %466 = vmatpush1.msra.mxu0 %v322
  %467 = vmatprep.subr.mxu0 0.0
  %468 = vmatpush1.msra.mxu0 %v323
  %469 = vmatprep.subr.mxu0 0.0
  %470 = vmatpush1.msra.mxu0 %v324
  %471 = vmatprep.subr.mxu0 0.0
  %472 = vmatpush1.msra.mxu0 %v325
  %473 = vmatprep.subr.mxu0 0.0
  %474 = vmatpush1.msra.mxu0 %v326
  %475 = vmatprep.subr.mxu0 0.0
  %476 = vmatpush1.msra.mxu0 %v327
  %477 = vmatprep.mubr.f32.mxu0 %v251
  %478 = vmatmul.mubr.f32.gmra.mrb[0].mxu0 %v250
  %v479 = vpop.f32.mrb[0].mxu0
  %v480 = vadd.f32 %v395, %v479
  %v481 = vpop.f32.mrb[0].mxu0
  %482 = vmatprep.mubr.f32.mxu0 %v255
  %483 = vmatmul.mubr.f32.gmra.mrb[0].mxu0 %v254
  %v484 = vpop.f32.mrb[0].mxu0
  %v485 = vadd.f32 %v400, %v484
  %v486 = vpop.f32.mrb[0].mxu0
  %487 = vmatprep.mubr.f32.mxu0 %v259
  %488 = vmatmul.mubr.f32.gmra.mrb[0].mxu0 %v258
  %v489 = vpop.f32.mrb[0].mxu0
  %v490 = vadd.f32 %v405, %v489
  %v491 = vpop.f32.mrb[0].mxu0
  %492 = vmatprep.mubr.f32.mxu0 %v263
  %493 = vmatmul.mubr.f32.gmra.mrb[0].mxu0 %v262
  %v494 = vpop.f32.mrb[0].mxu0
  %v495 = vadd.f32 %v410, %v494
  %v496 = vpop.f32.mrb[0].mxu0
  %497 = vdwg.mxu0
  %v498 = vld [vmem:[%s4] sm:$0xff]
  %v499 = vld [vmem:[%s4 + $0x8] sm:$0x3]
  %v500 = vld [vmem:[%s5] sm:$0xff]
  %v501 = vld [vmem:[%s5 + $0x8] sm:$0x3]
  %503 = vset.pattern.permute.xlu0 0
  %504 = vperm.xlu0 %503, %v500
  %v505 = vpop.permute.xlu0 %504
  %508 = vset.pattern.permute.xlu0 0
  %509 = vperm.xlu0 %508, %v501
  %v510 = vpop.permute.xlu0 %509
  %vm512 = vcmask 261120
  %v514 = vsel %vm512, %v498, 0
  %v517 = vsel %vm512, %v499, 0
  %519 = vmatprep.subr.mxu0 0.0
  %520 = vmatpush1.msra.mxu0 %v480
  %521 = vmatprep.subr.mxu0 0.0
  %522 = vmatpush1.msra.mxu0 %v485
  %523 = vmatprep.subr.mxu0 0.0
  %524 = vmatpush1.msra.mxu0 %v490
  %525 = vmatprep.subr.mxu0 0.0
  %526 = vmatpush1.msra.mxu0 %v495
  %527 = vmatprep.subr.mxu0 0.0
  %528 = vmatpush1.msra.mxu0 0.0
  %529 = vmatprep.subr.mxu0 0.0
  %530 = vmatpush1.msra.mxu0 0.0
  %531 = vmatprep.subr.mxu0 0.0
  %532 = vmatpush1.msra.mxu0 0.0
  %533 = vmatprep.subr.mxu0 0.0
  %534 = vmatpush1.msra.mxu0 0.0
  %535 = vmatprep.subr.mxu0 0.0
  %536 = vmatpush1.msra.mxu0 0.0
  %537 = vmatprep.subr.mxu0 0.0
  %538 = vmatpush1.msra.mxu0 0.0
  %539 = vmatprep.subr.mxu0 0.0
  %540 = vmatpush1.msra.mxu0 0.0
  %541 = vmatprep.subr.mxu0 0.0
  %542 = vmatpush1.msra.mxu0 0.0
  %543 = vmatprep.subr.mxu0 0.0
  %544 = vmatpush1.msra.mxu0 0.0
  %545 = vmatprep.subr.mxu0 0.0
  %546 = vmatpush1.msra.mxu0 0.0
  %547 = vmatprep.subr.mxu0 0.0
  %548 = vmatpush1.msra.mxu0 0.0
  %549 = vmatprep.subr.mxu0 0.0
  %550 = vmatpush1.msra.mxu0 0.0
  %551 = vmatprep.subr.mxu0 0.0
  %552 = vmatpush1.msra.mxu0 0.0
  %553 = vmatprep.subr.mxu0 0.0
  %554 = vmatpush1.msra.mxu0 0.0
  %555 = vmatprep.subr.mxu0 0.0
  %556 = vmatpush1.msra.mxu0 0.0
  %557 = vmatprep.subr.mxu0 0.0
  %558 = vmatpush1.msra.mxu0 0.0
  %559 = vmatprep.subr.mxu0 0.0
  %560 = vmatpush1.msra.mxu0 0.0
  %561 = vmatprep.subr.mxu0 0.0
  %562 = vmatpush1.msra.mxu0 0.0
  %563 = vmatprep.subr.mxu0 0.0
  %564 = vmatpush1.msra.mxu0 0.0
  %565 = vmatprep.subr.mxu0 0.0
  %566 = vmatpush1.msra.mxu0 0.0
  %567 = vmatprep.subr.mxu0 0.0
  %568 = vmatpush1.msra.mxu0 0.0
  %569 = vmatprep.subr.mxu0 0.0
  %570 = vmatpush1.msra.mxu0 0.0
  %571 = vmatprep.subr.mxu0 0.0
  %572 = vmatpush1.msra.mxu0 0.0
  %573 = vmatprep.subr.mxu0 0.0
  %574 = vmatpush1.msra.mxu0 0.0
  %575 = vmatprep.subr.mxu0 0.0
  %576 = vmatpush1.msra.mxu0 0.0
  %577 = vmatprep.subr.mxu0 0.0
  %578 = vmatpush1.msra.mxu0 0.0
  %579 = vmatprep.subr.mxu0 0.0
  %580 = vmatpush1.msra.mxu0 0.0
  %581 = vmatprep.subr.mxu0 0.0
  %582 = vmatpush1.msra.mxu0 0.0
  %583 = vmatprep.mubr.f32.mxu0 0.0
  %584 = vmatmul.mubr.f32.gmra.mrb[0].mxu0 %v514
  %v585 = vpop.f32.mrb[0].mxu0
  %v586 = vadd.f32 %v505, %v585
  %v587 = vpop.f32.mrb[0].mxu0
  %588 = vmatprep.mubr.f32.mxu0 0.0
  %589 = vmatmul.mubr.f32.gmra.mrb[0].mxu0 %v517
  %v590 = vpop.f32.mrb[0].mxu0
  %v591 = vadd.f32 %v510, %v590
  %v592 = vpop.f32.mrb[0].mxu0
  %593 = vdwg.mxu0
  %vm594 = vcmask 15360
  %595 = vst.msk [vmem:[%s6] sm:$0xff] %vm594, %v586
  %vm596 = vcmask 9216
  %597 = vst.msk [vmem:[%s6 + $0x8] sm:$0x3] %vm596, %v591
  // Predicated region
  $region26: #{tpu_custom_call.1} parent=0 // pred_check
    _
  $region27: #{tpu_custom_call.1} parent=0 // pred_check_branch
    %599 = sbr.rel (0) target = $region29
  $region28: #{tpu_custom_call.1} parent=0 // pred_region
    _
  $region29: #{tpu_custom_call.1} parent=0 // pred_fallthru
    _
  // Predicated region
  $region30: #{tpu_custom_call.1} parent=0 // pred_check
    _
  $region31: #{tpu_custom_call.1} parent=0 // pred_check_branch
    %601 = sbr.rel (0) target = $region33
  $region32: #{tpu_custom_call.1} parent=0 // pred_region
    _
  $region33: #{tpu_custom_call.1} parent=0 // pred_fallthru
    _

</llo_original>
